<compile_context>
chip_gen: v5e
topology: v5e:2x2
jax: 0.10.0
libtpu: 0.0.40
codegen_flags: <defaults>
</compile_context>

<pallas_src>
import functools

import jax
import jax.numpy as jnp
from jax.experimental import pallas as pl
from jax.experimental.pallas import tpu as pltpu

LRELU_SLOPE = 0.2
BN_EPS = 1e-5
IN_DIM = 512


def _make_kernel(aux_dim, z_dim, n_elems):
    """Kernel closure over static dims.  Packed-buffer row layout:
         rows [0:aux_dim], cols [0:z_dim]  -> w2 (f32, cast to bf16 in-kernel)
         row  aux_dim,     cols [0:aux_dim]-> b1
         row  aux_dim+1,   cols [0:z_dim]  -> b2
         row  aux_dim+2,   cols [0:aux_dim]-> gamma (pre-broadcast row)
         row  aux_dim+3,   cols [0:aux_dim]-> beta  (pre-broadcast row)
    """
    r_b1 = aux_dim
    r_b2 = aux_dim + 1
    r_g = aux_dim + 2
    r_b = aux_dim + 3
    inv_n = 1.0 / float(n_elems)

    def kernel(x_ref, w1_ref, p_ref, o_ref):
        # ---- static slices of the packed parameter buffer (zero-cost views) ----
        b1 = p_ref[r_b1:r_b1 + 1, :aux_dim]        # (1, aux_dim)
        b2 = p_ref[r_b2:r_b2 + 1, :z_dim]          # (1, z_dim)
        gamma_row = p_ref[r_g:r_g + 1, :aux_dim]   # (1, aux_dim)
        beta_row = p_ref[r_b:r_b + 1, :aux_dim]    # (1, aux_dim)
        w2 = p_ref[:aux_dim, :z_dim].astype(jnp.bfloat16)

        # ---- fc1 on MXU: bf16 operands, f32 accumulation ----
        x16 = x_ref[...].astype(jnp.bfloat16)
        h = jnp.dot(x16, w1_ref[...], preferred_element_type=jnp.float32) + b1

        # ---- bn1: single-channel BatchNorm, two-pass centered stats ----
        # (centered form avoids E[x^2]-E[x]^2 cancellation; partial sublane
        #  sums first so only narrow (1, aux_dim) rows hit the lane reduce)
        col_sum = jnp.sum(h, axis=0, keepdims=True)          # (1, aux_dim)
        mean = jnp.sum(col_sum) * inv_n                      # scalar
        d = h - mean
        col_sq = jnp.sum(d * d, axis=0, keepdims=True)       # (1, aux_dim)
        var = jnp.sum(col_sq) * inv_n                        # biased variance
        inv_std = jax.lax.rsqrt(var + BN_EPS)

        scale = gamma_row * inv_std                          # (1, aux_dim)
        h = d * scale + beta_row                             # fused BN affine

        # ---- leaky ReLU (slope 0.2), folded to a single max ----
        h = jnp.maximum(h, LRELU_SLOPE * h)

        # ---- fc2 on MXU: bf16 operands, f32 accumulation ----
        y = jnp.dot(h.astype(jnp.bfloat16), w2,
                    preferred_element_type=jnp.float32) + b2

        # ---- tanh (EUP, f32) ----
        o_ref[...] = jnp.tanh(y)

    return kernel


def prepare_params(params):
    """One-time parameter preparation (hoisted out of the per-call path).

    Returns bf16 w1 plus a single (8,128)-aligned f32 buffer holding all the
    small parameters, so the forward pass issues only 3 input DMAs.
    """
    aux_dim = params["w1"].shape[1]
    z_dim = params["w2"].shape[1]

    w1 = params["w1"].astype(jnp.bfloat16)                       # (512, aux_dim)

    rows = -(-(aux_dim + 4) // 8) * 8                            # round up to 8
    packed = jnp.zeros((rows, 128), jnp.float32)
    packed = packed.at[:aux_dim, :z_dim].set(params["w2"].astype(jnp.float32))
    packed = packed.at[aux_dim, :aux_dim].set(
        params["b1"].reshape(-1).astype(jnp.float32))
    packed = packed.at[aux_dim + 1, :z_dim].set(
        params["b2"].reshape(-1).astype(jnp.float32))
    packed = packed.at[aux_dim + 2, :aux_dim].set(
        jnp.full((aux_dim,), params["gamma"], jnp.float32))
    packed = packed.at[aux_dim + 3, :aux_dim].set(
        jnp.full((aux_dim,), params["beta"], jnp.float32))

    return {"w1": w1, "packed": packed, "aux_dim": aux_dim, "z_dim": z_dim}


def content_predictor_forward(h, prepared):
    """h: (B, 1, 512) float32.  `prepared` from prepare_params().  Returns (B, 1, z_dim)."""
    B = h.shape[0]
    aux_dim = prepared["aux_dim"]
    z_dim = prepared["z_dim"]
    in_dim = h.shape[-1]

    x2d = h.reshape(B, in_dim)                                   # metadata-only reshape

    kernel = _make_kernel(aux_dim, z_dim, B * aux_dim)
    vmem = pl.BlockSpec(memory_space=pltpu.MemorySpace.VMEM)

    flops = 2 * B * in_dim * aux_dim + 2 * B * aux_dim * z_dim
    bytes_accessed = (B * in_dim * 4                             # x (f32)
                      + in_dim * aux_dim * 2                     # w1 (bf16)
                      + prepared["packed"].size * 4              # packed params
                      + B * z_dim * 4)                           # out

    out = pl.pallas_call(
        kernel,
        out_shape=jax.ShapeDtypeStruct((B, z_dim), jnp.float32),
        in_specs=[vmem, vmem, vmem],
        out_specs=vmem,
        cost_estimate=pl.CostEstimate(
            flops=flops,
            transcendentals=B * z_dim + 1,                       # tanh + rsqrt
            bytes_accessed=bytes_accessed),
    )(x2d, prepared["w1"], prepared["packed"])
    return out.reshape(B, 1, z_dim)


def init_params(key, aux_dim, z_dim, in_dim=IN_DIM):
    """Deterministic synthetic parameters (weights stored transposed: (in, out))."""
    k1, k2, k3, k4 = jax.random.split(key, 4)
    w1 = jax.random.normal(k1, (in_dim, aux_dim), jnp.float32) * (1.0 / jnp.sqrt(in_dim))
    b1 = jax.random.normal(k2, (1, aux_dim), jnp.float32) * 0.01
    w2 = jax.random.normal(k3, (aux_dim, z_dim), jnp.float32) * (1.0 / jnp.sqrt(aux_dim))
    b2 = jax.random.normal(k4, (1, z_dim), jnp.float32) * 0.01
    gamma = jnp.float32(1.0)     # BatchNorm1d affine weight
    beta = jnp.float32(0.0)      # BatchNorm1d affine bias
    return {"w1": w1, "b1": b1, "gamma": gamma, "beta": beta, "w2": w2, "b2": b2}


def _reference_forward(h, params, bf16_matmul):
    """Pure-JAX reference.  bf16_matmul=True mirrors the kernel's MXU dtypes."""
    B = h.shape[0]
    x = h.reshape(B, -1).astype(jnp.float32)
    w1, w2 = params["w1"], params["w2"]
    if bf16_matmul:
        x_in, w1_in = x.astype(jnp.bfloat16), w1.astype(jnp.bfloat16)
    else:
        x_in, w1_in = x, w1
    y = jnp.dot(x_in, w1_in, preferred_element_type=jnp.float32) + params["b1"]

    n = float(y.shape[0] * y.shape[1])
    mean = jnp.sum(y) / n
    d = y - mean
    var = jnp.sum(d * d) / n
    inv_std = jax.lax.rsqrt(var + BN_EPS)
    y = d * (inv_std * params["gamma"]) + params["beta"]
    y = jnp.maximum(y, LRELU_SLOPE * y)

    if bf16_matmul:
        y_in, w2_in = y.astype(jnp.bfloat16), w2.astype(jnp.bfloat16)
    else:
        y_in, w2_in = y, w2
    y = jnp.dot(y_in, w2_in, preferred_element_type=jnp.float32) + params["b2"]
    return jnp.tanh(y).reshape(B, 1, -1)


if __name__ == "__main__":
    # config['model_params'] = {'aux_dim': 32, 'z_dim': 8}
    aux_dim, z_dim = 32, 8
    B = 8

    key = jax.random.PRNGKey(0)
    k_in, k_par = jax.random.split(key)
    h_in = jax.random.normal(k_in, (B, 1, IN_DIM), jnp.float32)
    params = init_params(k_par, aux_dim, z_dim)

    # One-time prep (hoisted: bf16 cast of weights + packing of small params).
    prepared = jax.tree_util.tree_map(
        lambda x: jax.block_until_ready(x) if isinstance(x, jax.Array) else x,
        prepare_params(params))

    out = content_predictor_forward(h_in, prepared)
    out = jax.block_until_ready(out)
    assert out.shape == (B, 1, z_dim)

    # Primary check: same numerics as the kernel (bf16 MXU operands, f32 accum).
    ref_matched = _reference_forward(h_in, params, bf16_matmul=True)
    assert jnp.allclose(out, ref_matched, atol=1e-4, rtol=1e-4), "mismatch vs matched reference"

    # Sanity check vs full-f32 PyTorch-style semantics (bf16 operand rounding only).
    ref_f32 = _reference_forward(h_in, params, bf16_matmul=False)
    assert jnp.allclose(out, ref_f32, atol=5e-2, rtol=5e-2), "mismatch vs f32 reference"

    print("KERNEL_OK")
</pallas_src>

<mosaic_0001>
module attributes {stable_mosaic.version = 11 : i64} {
  func.func @kernel(%arg0: memref<8x512xf32, #tpu.memory_space<vmem>>, %arg1: memref<512x32xbf16, #tpu.memory_space<vmem>>, %arg2: memref<40x128xf32, #tpu.memory_space<vmem>>, %arg3: memref<8x8xf32, #tpu.memory_space<vmem>>) attributes {dimension_semantics = [], scalar_prefetch = 0 : i64, scratch_operands = 0 : i64, tpu.core_type = #tpu.core_type<tc>} {
    %c32 = arith.constant 32 : index
    %c0 = arith.constant 0 : index
    %0 = vector.load %arg2[%c32, %c0] : memref<40x128xf32, #tpu.memory_space<vmem>>, vector<1x32xf32>
    %c33 = arith.constant 33 : index
    %c0_0 = arith.constant 0 : index
    %1 = vector.load %arg2[%c33, %c0_0] : memref<40x128xf32, #tpu.memory_space<vmem>>, vector<1x8xf32>
    %c34 = arith.constant 34 : index
    %c0_1 = arith.constant 0 : index
    %2 = vector.load %arg2[%c34, %c0_1] : memref<40x128xf32, #tpu.memory_space<vmem>>, vector<1x32xf32>
    %c35 = arith.constant 35 : index
    %c0_2 = arith.constant 0 : index
    %3 = vector.load %arg2[%c35, %c0_2] : memref<40x128xf32, #tpu.memory_space<vmem>>, vector<1x32xf32>
    %c0_3 = arith.constant 0 : index
    %c0_4 = arith.constant 0 : index
    %4 = vector.load %arg2[%c0_3, %c0_4] : memref<40x128xf32, #tpu.memory_space<vmem>>, vector<32x8xf32>
    %5 = arith.truncf %4 : vector<32x8xf32> to vector<32x8xbf16>
    %c0_5 = arith.constant 0 : index
    %c0_6 = arith.constant 0 : index
    %6 = vector.load %arg0[%c0_5, %c0_6] : memref<8x512xf32, #tpu.memory_space<vmem>>, vector<8x512xf32>
    %7 = arith.truncf %6 : vector<8x512xf32> to vector<8x512xbf16>
    %c0_7 = arith.constant 0 : index
    %c0_8 = arith.constant 0 : index
    %8 = vector.load %arg1[%c0_7, %c0_8] : memref<512x32xbf16, #tpu.memory_space<vmem>>, vector<512x32xbf16>
    %cst = arith.constant dense<0.000000e+00> : vector<8x32xf32>
    %9 = tpu.matmul %7, %8, %cst {dimension_numbers = #tpu.dot_dimension_numbers<[1], [0], [0], [1], [0, 0, 1, 1], [], []>} : vector<8x512xbf16>, vector<512x32xbf16>, vector<8x32xf32> -> vector<8x32xf32>
    %10 = vector.broadcast %0 : vector<1x32xf32> to vector<8x32xf32>
    %11 = arith.addf %9, %10 : vector<8x32xf32>
    %cst_9 = arith.constant dense<0.000000e+00> : vector<32xf32>
    %12 = vector.multi_reduction <add>, %11, %cst_9 [0] : vector<8x32xf32> to vector<32xf32>
    %13 = vector.shape_cast %12 : vector<32xf32> to vector<1x32xf32>
    %14 = vector.shape_cast %13 : vector<1x32xf32> to vector<1x1x32xf32>
    %cst_10 = arith.constant dense<0.000000e+00> : vector<1xf32>
    %15 = vector.multi_reduction <add>, %14, %cst_10 [1, 2] : vector<1x1x32xf32> to vector<1xf32>
    %16 = vector.shape_cast %15 : vector<1xf32> to vector<1x1x1xf32>
    %17 = vector.extract %16[0, 0, 0] : f32 from vector<1x1x1xf32>
    %cst_11 = arith.constant 3.906250e-03 : f32
    %18 = arith.mulf %17, %cst_11 : f32
    %19 = vector.broadcast %18 : f32 to vector<8x32xf32>
    %20 = arith.subf %11, %19 : vector<8x32xf32>
    %21 = arith.mulf %20, %20 : vector<8x32xf32>
    %cst_12 = arith.constant dense<0.000000e+00> : vector<32xf32>
    %22 = vector.multi_reduction <add>, %21, %cst_12 [0] : vector<8x32xf32> to vector<32xf32>
    %23 = vector.shape_cast %22 : vector<32xf32> to vector<1x32xf32>
    %24 = vector.shape_cast %23 : vector<1x32xf32> to vector<1x1x32xf32>
    %cst_13 = arith.constant dense<0.000000e+00> : vector<1xf32>
    %25 = vector.multi_reduction <add>, %24, %cst_13 [1, 2] : vector<1x1x32xf32> to vector<1xf32>
    %26 = vector.shape_cast %25 : vector<1xf32> to vector<1x1x1xf32>
    %27 = vector.extract %26[0, 0, 0] : f32 from vector<1x1x1xf32>
    %cst_14 = arith.constant 3.906250e-03 : f32
    %28 = arith.mulf %27, %cst_14 : f32
    %cst_15 = arith.constant 9.99999974E-6 : f32
    %29 = arith.addf %28, %cst_15 : f32
    %30 = math.rsqrt %29 : f32
    %31 = vector.broadcast %30 : f32 to vector<1x32xf32>
    %32 = arith.mulf %2, %31 : vector<1x32xf32>
    %33 = vector.broadcast %32 : vector<1x32xf32> to vector<8x32xf32>
    %34 = arith.mulf %20, %33 : vector<8x32xf32>
    %35 = vector.broadcast %3 : vector<1x32xf32> to vector<8x32xf32>
    %36 = arith.addf %34, %35 : vector<8x32xf32>
    %cst_16 = arith.constant 2.000000e-01 : f32
    %37 = vector.broadcast %cst_16 : f32 to vector<8x32xf32>
    %38 = arith.mulf %37, %36 : vector<8x32xf32>
    %39 = arith.maximumf %36, %38 : vector<8x32xf32>
    %40 = arith.truncf %39 : vector<8x32xf32> to vector<8x32xbf16>
    %cst_17 = arith.constant dense<0.000000e+00> : vector<8x8xf32>
    %41 = tpu.matmul %40, %5, %cst_17 {dimension_numbers = #tpu.dot_dimension_numbers<[1], [0], [0], [1], [0, 0, 1, 1], [], []>} : vector<8x32xbf16>, vector<32x8xbf16>, vector<8x8xf32> -> vector<8x8xf32>
    %42 = vector.broadcast %1 : vector<1x8xf32> to vector<8x8xf32>
    %43 = arith.addf %41, %42 : vector<8x8xf32>
    %44 = math.tanh %43 : vector<8x8xf32>
    %c0_18 = arith.constant 0 : index
    %c0_19 = arith.constant 0 : index
    %45 = vector.load %arg3[%c0_18, %c0_19] : memref<8x8xf32, #tpu.memory_space<vmem>>, vector<8x8xf32>
    tpu.vector_store %arg3[%c0_18, %c0_19], %44 {strides = array<i32>} : memref<8x8xf32, #tpu.memory_space<vmem>>, vector<8x8xf32>,
    return
  }
}

</mosaic_0001>

<llo_original>
// kernel: tpu_custom_call.1
$region0: #{tpu_custom_call.1}
  #allocation0 [shape = 'u32[]', space=smem, size = 0x4, offset = 0x4, fixed_abs, tag = 'smem constant byte address 0x4 - core index']
  #allocation1 [shape = 'u32[72,128]{1,0:T(1,128)}', space=vmem, size = 0x9000, scoped, tag = 'internal scratch']
  %s0 = inlined_call_operand.vmem [shape: f32[8,512], index: 0, kind: input, shape index: {}]
  %s1 = inlined_call_operand.vmem [shape: bf16[512,32], index: 1, kind: input, shape index: {}]
  %s2 = inlined_call_operand.vmem [shape: f32[40,128], index: 2, kind: input, shape index: {}]
  %s3 = inlined_call_operand.hbm [shape: f32[8,8], index: 3, kind: output, shape index: {}]
  %s4 = sld [smem:[#allocation0]]
  $region22: #{tpu_custom_call.1} parent=0
    _
  %s6 = ssub.s32 1, %s4
  %s7 = scalar_select 0, %s6, %s4
  $region1: #{tpu_custom_call.1} parent=0
    #allocation2 [shape = 'u8[4096]{0}', space=vmem, size = 0x1000, scoped, tag = 'output window, operand 0, single buffered']
    #allocation3 [shape = 's32[1]{0}', space=sflag, size = 0x4, scoped, tag = 'scoped memory for tpu_custom_call.1']
    %8 = vsyncpa [#allocation3], 0
    // Predicated region
    $region2: #{tpu_custom_call.1} parent=1 // pred_check
      _
    $region3: #{tpu_custom_call.1} parent=1 // pred_check_branch
      %10 = sbr.rel (0) target = $region5
    $region4: #{tpu_custom_call.1} parent=1 // pred_region
      _
    $region5: #{tpu_custom_call.1} parent=1 // pred_fallthru
      _
    // Predicated region
    $region6: #{tpu_custom_call.1} parent=1 // pred_check
      _
    $region7: #{tpu_custom_call.1} parent=1 // pred_check_branch
      %12 = sbr.rel (0) target = $region9
    $region8: #{tpu_custom_call.1} parent=1 // pred_region
      _
    $region9: #{tpu_custom_call.1} parent=1 // pred_fallthru
      _
    // Predicated region
    $region10: #{tpu_custom_call.1} parent=1 // pred_check
      _
    $region11: #{tpu_custom_call.1} parent=1 // pred_check_branch
      %14 = sbr.rel (0) target = $region13
    $region12: #{tpu_custom_call.1} parent=1 // pred_region
      _
    $region13: #{tpu_custom_call.1} parent=1 // pred_fallthru
      _
    %v16 = vld [vmem:[%s2 + $0x20] sm:$0x1]
    %v17 = vld [vmem:[%s2 + $0x21] sm:$0x1]
    %v18 = vld [vmem:[%s2 + $0x22] sm:$0x1]
    %v19 = vld [vmem:[%s2 + $0x23] sm:$0x1]
    %v20 = vld [vmem:[%s2] sm:$0xff]
    %v21 = vld [vmem:[%s2 + $0x8] sm:$0xff]
    %v22 = vld [vmem:[%s2 + $0x10] sm:$0xff]
    %v23 = vld [vmem:[%s2 + $0x18] sm:$0xff]
    %v24 = vpack.c.bf16 %v21, %v20
    %v25 = vpack.c.bf16 %v23, %v22
    %v26 = vld [vmem:[%s0] sm:$0xff]
    %v27 = vld [vmem:[%s0 + $0x8] sm:$0xff]
    %v28 = vld [vmem:[%s0 + $0x10] sm:$0xff]
    %v29 = vld [vmem:[%s0 + $0x18] sm:$0xff]
    %v30 = vpack.c.bf16 %v26, %v26
    %v31 = vpack.c.bf16 %v27, %v27
    %v32 = vpack.c.bf16 %v28, %v28
    %v33 = vpack.c.bf16 %v29, %v29
    %v34 = vld [vmem:[%s1] sm:$0xf]
    %v35 = vld [vmem:[%s1 + $0x4] sm:$0xf]
    %v36 = vld [vmem:[%s1 + $0x8] sm:$0xf]
    %v37 = vld [vmem:[%s1 + $0xc] sm:$0xf]
    %v38 = vld [vmem:[%s1 + $0x10] sm:$0xf]
    %v39 = vld [vmem:[%s1 + $0x14] sm:$0xf]
    %v40 = vld [vmem:[%s1 + $0x18] sm:$0xf]
    %v41 = vld [vmem:[%s1 + $0x1c] sm:$0xf]
    %v42 = vld [vmem:[%s1 + $0x20] sm:$0xf]
    %v43 = vld [vmem:[%s1 + $0x24] sm:$0xf]
    %v44 = vld [vmem:[%s1 + $0x28] sm:$0xf]
    %v45 = vld [vmem:[%s1 + $0x2c] sm:$0xf]
    %v46 = vld [vmem:[%s1 + $0x30] sm:$0xf]
    %v47 = vld [vmem:[%s1 + $0x34] sm:$0xf]
    %v48 = vld [vmem:[%s1 + $0x38] sm:$0xf]
    %v49 = vld [vmem:[%s1 + $0x3c] sm:$0xf]
    %v50 = vld [vmem:[%s1 + $0x40] sm:$0xf]
    %v51 = vld [vmem:[%s1 + $0x44] sm:$0xf]
    %v52 = vld [vmem:[%s1 + $0x48] sm:$0xf]
    %v53 = vld [vmem:[%s1 + $0x4c] sm:$0xf]
    %v54 = vld [vmem:[%s1 + $0x50] sm:$0xf]
    %v55 = vld [vmem:[%s1 + $0x54] sm:$0xf]
    %v56 = vld [vmem:[%s1 + $0x58] sm:$0xf]
    %v57 = vld [vmem:[%s1 + $0x5c] sm:$0xf]
    %v58 = vld [vmem:[%s1 + $0x60] sm:$0xf]
    %v59 = vld [vmem:[%s1 + $0x64] sm:$0xf]
    %v60 = vld [vmem:[%s1 + $0x68] sm:$0xf]
    %v61 = vld [vmem:[%s1 + $0x6c] sm:$0xf]
    %v62 = vld [vmem:[%s1 + $0x70] sm:$0xf]
    %v63 = vld [vmem:[%s1 + $0x74] sm:$0xf]
    %v64 = vld [vmem:[%s1 + $0x78] sm:$0xf]
    %v65 = vld [vmem:[%s1 + $0x7c] sm:$0xf]
    %v66 = vld [vmem:[%s1 + $0x80] sm:$0xf]
    %v67 = vld [vmem:[%s1 + $0x84] sm:$0xf]
    %v68 = vld [vmem:[%s1 + $0x88] sm:$0xf]
    %v69 = vld [vmem:[%s1 + $0x8c] sm:$0xf]
    %v70 = vld [vmem:[%s1 + $0x90] sm:$0xf]
    %v71 = vld [vmem:[%s1 + $0x94] sm:$0xf]
    %v72 = vld [vmem:[%s1 + $0x98] sm:$0xf]
    %v73 = vld [vmem:[%s1 + $0x9c] sm:$0xf]
    %v74 = vld [vmem:[%s1 + $0xa0] sm:$0xf]
    %v75 = vld [vmem:[%s1 + $0xa4] sm:$0xf]
    %v76 = vld [vmem:[%s1 + $0xa8] sm:$0xf]
    %v77 = vld [vmem:[%s1 + $0xac] sm:$0xf]
    %v78 = vld [vmem:[%s1 + $0xb0] sm:$0xf]
    %v79 = vld [vmem:[%s1 + $0xb4] sm:$0xf]
    %v80 = vld [vmem:[%s1 + $0xb8] sm:$0xf]
    %v81 = vld [vmem:[%s1 + $0xbc] sm:$0xf]
    %v82 = vld [vmem:[%s1 + $0xc0] sm:$0xf]
    %v83 = vld [vmem:[%s1 + $0xc4] sm:$0xf]
    %v84 = vld [vmem:[%s1 + $0xc8] sm:$0xf]
    %v85 = vld [vmem:[%s1 + $0xcc] sm:$0xf]
    %v86 = vld [vmem:[%s1 + $0xd0] sm:$0xf]
    %v87 = vld [vmem:[%s1 + $0xd4] sm:$0xf]
    %v88 = vld [vmem:[%s1 + $0xd8] sm:$0xf]
    %v89 = vld [vmem:[%s1 + $0xdc] sm:$0xf]
    %v90 = vld [vmem:[%s1 + $0xe0] sm:$0xf]
    %v91 = vld [vmem:[%s1 + $0xe4] sm:$0xf]
    %v92 = vld [vmem:[%s1 + $0xe8] sm:$0xf]
    %v93 = vld [vmem:[%s1 + $0xec] sm:$0xf]
    %v94 = vld [vmem:[%s1 + $0xf0] sm:$0xf]
    %v95 = vld [vmem:[%s1 + $0xf4] sm:$0xf]
    %v96 = vld [vmem:[%s1 + $0xf8] sm:$0xf]
    %v97 = vld [vmem:[%s1 + $0xfc] sm:$0xf]
    %v98 = vperm.slane %v16, 0
    %v163 = vunpack.c.l.b16 %v34
    %v164 = vunpack.c.l.b16 %v35
    %v165 = vunpack.c.l.b16 %v36
    %v166 = vunpack.c.l.b16 %v37
    %v167 = vunpack.c.l.b16 %v38
    %v168 = vunpack.c.l.b16 %v39
    %v169 = vunpack.c.l.b16 %v40
    %v170 = vunpack.c.l.b16 %v41
    %v171 = vunpack.c.l.b16 %v42
    %v172 = vunpack.c.l.b16 %v43
    %v173 = vunpack.c.l.b16 %v44
    %v174 = vunpack.c.l.b16 %v45
    %v175 = vunpack.c.l.b16 %v46
    %v176 = vunpack.c.l.b16 %v47
    %v177 = vunpack.c.l.b16 %v48
    %v178 = vunpack.c.l.b16 %v49
    %v179 = vunpack.c.l.b16 %v50
    %v180 = vunpack.c.l.b16 %v51
    %v181 = vunpack.c.l.b16 %v52
    %v182 = vunpack.c.l.b16 %v53
    %v183 = vunpack.c.l.b16 %v54
    %v184 = vunpack.c.l.b16 %v55
    %v185 = vunpack.c.l.b16 %v56
    %v186 = vunpack.c.l.b16 %v57
    %v187 = vunpack.c.l.b16 %v58
    %v188 = vunpack.c.l.b16 %v59
    %v189 = vunpack.c.l.b16 %v60
    %v190 = vunpack.c.l.b16 %v61
    %v191 = vunpack.c.l.b16 %v62
    %v192 = vunpack.c.l.b16 %v63
    %v193 = vunpack.c.l.b16 %v64
    %v194 = vunpack.c.l.b16 %v65
    %v195 = vunpack.c.l.b16 %v66
    %v196 = vunpack.c.l.b16 %v67
    %v197 = vunpack.c.l.b16 %v68
    %v198 = vunpack.c.l.b16 %v69
    %v199 = vunpack.c.l.b16 %v70
    %v200 = vunpack.c.l.b16 %v71
    %v201 = vunpack.c.l.b16 %v72
    %v202 = vunpack.c.l.b16 %v73
    %v203 = vunpack.c.l.b16 %v74
    %v204 = vunpack.c.l.b16 %v75
    %v205 = vunpack.c.l.b16 %v76
    %v206 = vunpack.c.l.b16 %v77
    %v207 = vunpack.c.l.b16 %v78
    %v208 = vunpack.c.l.b16 %v79
    %v209 = vunpack.c.l.b16 %v80
    %v210 = vunpack.c.l.b16 %v81
    %v211 = vunpack.c.l.b16 %v82
    %v212 = vunpack.c.l.b16 %v83
    %v213 = vunpack.c.l.b16 %v84
    %v214 = vunpack.c.l.b16 %v85
    %v215 = vunpack.c.l.b16 %v86
    %v216 = vunpack.c.l.b16 %v87
    %v217 = vunpack.c.l.b16 %v88
    %v218 = vunpack.c.l.b16 %v89
    %v219 = vunpack.c.l.b16 %v90
    %v220 = vunpack.c.l.b16 %v91
    %v221 = vunpack.c.l.b16 %v92
    %v222 = vunpack.c.l.b16 %v93
    %v223 = vunpack.c.l.b16 %v94
    %v224 = vunpack.c.l.b16 %v95
    %v225 = vunpack.c.l.b16 %v96
    %v226 = vunpack.c.l.b16 %v97
    %v227 = vpack.c.b16 %v164, %v163
    %v228 = vpack.c.b16 %v166, %v165
    %v229 = vpack.c.b16 %v168, %v167
    %v230 = vpack.c.b16 %v170, %v169
    %v231 = vpack.c.b16 %v172, %v171
    %v232 = vpack.c.b16 %v174, %v173
    %v233 = vpack.c.b16 %v176, %v175
    %v234 = vpack.c.b16 %v178, %v177
    %v235 = vpack.c.b16 %v180, %v179
    %v236 = vpack.c.b16 %v182, %v181
    %v237 = vpack.c.b16 %v184, %v183
    %v238 = vpack.c.b16 %v186, %v185
    %v239 = vpack.c.b16 %v188, %v187
    %v240 = vpack.c.b16 %v190, %v189
    %v241 = vpack.c.b16 %v192, %v191
    %v242 = vpack.c.b16 %v194, %v193
    %v243 = vpack.c.b16 %v196, %v195
    %v244 = vpack.c.b16 %v198, %v197
    %v245 = vpack.c.b16 %v200, %v199
    %v246 = vpack.c.b16 %v202, %v201
    %v247 = vpack.c.b16 %v204, %v203
    %v248 = vpack.c.b16 %v206, %v205
    %v249 = vpack.c.b16 %v208, %v207
    %v250 = vpack.c.b16 %v210, %v209
    %v251 = vpack.c.b16 %v212, %v211
    %v252 = vpack.c.b16 %v214, %v213
    %v253 = vpack.c.b16 %v216, %v215
    %v254 = vpack.c.b16 %v218, %v217
    %v255 = vpack.c.b16 %v220, %v219
    %v256 = vpack.c.b16 %v222, %v221
    %v257 = vpack.c.b16 %v224, %v223
    %v258 = vpack.c.b16 %v226, %v225
    %291 = vmatpush.bf16.msra.mxu0 %v234
    %292 = vmatpush.bf16.msra.mxu0 %v233
    %293 = vmatpush.bf16.msra.mxu0 %v232
    %294 = vmatpush.bf16.msra.mxu0 %v231
    %295 = vmatpush.bf16.msra.mxu0 %v230
    %296 = vmatpush.bf16.msra.mxu0 %v229
    %297 = vmatpush.bf16.msra.mxu0 %v228
    %298 = vmatpush.bf16.msra.mxu0 %v227
    %299 = vmatmul.bf16.gmra.mxu0 %v30
    %v300 = vpop.f32.mrf.mxu0
    %v301 = vadd.f32 %v98, %v300
    %v302 = vpop.f32.mrf.mxu0
    %303 = vdwg.mxu0
    %304 = vmatpush.bf16.msra.mxu0 %v242
    %305 = vmatpush.bf16.msra.mxu0 %v241
    %306 = vmatpush.bf16.msra.mxu0 %v240
    %307 = vmatpush.bf16.msra.mxu0 %v239
    %308 = vmatpush.bf16.msra.mxu0 %v238
    %309 = vmatpush.bf16.msra.mxu0 %v237
    %310 = vmatpush.bf16.msra.mxu0 %v236
    %311 = vmatpush.bf16.msra.mxu0 %v235
    %312 = vmatmul.bf16.gmra.mxu0 %v31
    %v313 = vpop.f32.mrf.mxu0
    %v314 = vadd.f32 %v301, %v313
    %v315 = vpop.f32.mrf.mxu0
    %316 = vdwg.mxu0
    %317 = vmatpush.bf16.msra.mxu0 %v250
    %318 = vmatpush.bf16.msra.mxu0 %v249
    %319 = vmatpush.bf16.msra.mxu0 %v248
    %320 = vmatpush.bf16.msra.mxu0 %v247
    %321 = vmatpush.bf16.msra.mxu0 %v246
    %322 = vmatpush.bf16.msra.mxu0 %v245
    %323 = vmatpush.bf16.msra.mxu0 %v244
    %324 = vmatpush.bf16.msra.mxu0 %v243
    %325 = vmatmul.bf16.gmra.mxu0 %v32
    %v326 = vpop.f32.mrf.mxu0
    %v327 = vadd.f32 %v314, %v326
    %v328 = vpop.f32.mrf.mxu0
    %329 = vdwg.mxu0
    %330 = vmatpush.bf16.msra.mxu0 %v258
    %331 = vmatpush.bf16.msra.mxu0 %v257
    %332 = vmatpush.bf16.msra.mxu0 %v256
    %333 = vmatpush.bf16.msra.mxu0 %v255
    %334 = vmatpush.bf16.msra.mxu0 %v254
    %335 = vmatpush.bf16.msra.mxu0 %v253
    %336 = vmatpush.bf16.msra.mxu0 %v252
    %337 = vmatpush.bf16.msra.mxu0 %v251
    %338 = vmatmul.bf16.gmra.mxu0 %v33
    %v339 = vpop.f32.mrf.mxu0
    %v340 = vadd.f32 %v327, %v339
    %v341 = vpop.f32.mrf.mxu0
    %342 = vdwg.mxu0
    %vm343 = vcmask 261120
    %v344 = vsel %vm343, %v340, 0.0
    %v345 = vrot.slane %v344, 4
    %v346 = vadd.f32 %v344, %v345
    %v347 = vrot.slane %v346, 2
    %v348 = vadd.f32 %v346, %v347
    %v349 = vrot.slane %v348, 1
    %v350 = vadd.f32 %v348, %v349
    %vm351 = vcmask 253952
    %v352 = vsel %vm351, %v350, 0.0
    %353 = vadd.xlane.f32.xlu0 %v352
    %v354 = vpop.xlane.xlu0 %353
    %v355 = vrot.slane %v354, 4
    %v356 = vadd.f32 %v354, %v355
    %v357 = vrot.slane %v356, 2
    %v358 = vadd.f32 %v356, %v357
    %v359 = vrot.slane %v358, 1
    %v360 = vadd.f32 %v358, %v359
    %s361 = vtos %v360
    %s362 = smul.f32 %s361, 0.00390625
    %v363 = vstv %s362
    %v364 = vsub.f32 %v340, %v363
    %v365 = vmul.f32 %v364, %v364
    %v366 = vsel %vm343, %v365, 0.0
    %v367 = vrot.slane %v366, 4
    %v368 = vadd.f32 %v366, %v367
    %v369 = vrot.slane %v368, 2
    %v370 = vadd.f32 %v368, %v369
    %v371 = vrot.slane %v370, 1
    %v372 = vadd.f32 %v370, %v371
    %v373 = vsel %vm351, %v372, 0.0
    %374 = vadd.xlane.f32.xlu0 %v373
    %v375 = vpop.xlane.xlu0 %374
    %v376 = vrot.slane %v375, 4
    %v377 = vadd.f32 %v375, %v376
    %v378 = vrot.slane %v377, 2
    %v379 = vadd.f32 %v377, %v378
    %v380 = vrot.slane %v379, 1
    %v381 = vadd.f32 %v379, %v380
    %s382 = vtos %v381
    %s383 = smul.f32 %s382, 0.00390625
    %s384 = sadd.f32 %s383, 1e-05
    %v385 = vstv %s384
    %v386 = vrsqrt.pop %v385
    %v387 = vmul.f32 %v386, %v385
    %v388 = vmul.f32 %v387, %v386
    %v389 = vmul.f32 0.5, %v388
    %v390 = vsub.f32 1.5, %v389
    %v391 = vmul.f32 %v386, %v390
    %vm392 = vweird.f32 %v385
    %vm393 = vweird.f32 %v386
    %vm394 = vmor %vm392, %vm393
    %v395 = vsel %vm394, %v386, %v391
    %s396 = vtos %v395
    %v397 = vstv %s396
    %v398 = vmul.f32 %v18, %v397
    %v399 = vperm.slane %v398, 0
    %v400 = vmul.f32 %v364, %v399
    %v401 = vperm.slane %v19, 0
    %v402 = vadd.f32 %v400, %v401
    %v403 = vmul.f32 %v402, 0.2
    %v404 = vmax.f32 %v402, %v403
    %v405 = vpack.c.bf16 %v404, %v404
    %v406 = vperm.slane %v17, 0
    %v408 = vsel %vm343, %v405, 0
    %410 = vmatpush.bf16.msra.mxu0 0
    %411 = vmatpush.bf16.msra.mxu0 0
    %412 = vmatpush.bf16.msra.mxu0 0
    %413 = vmatpush.bf16.msra.mxu0 0
    %414 = vmatpush.bf16.msra.mxu0 0
    %415 = vmatpush.bf16.msra.mxu0 0
    %416 = vmatpush.bf16.msra.mxu0 %v25
    %417 = vmatpush.bf16.msra.mxu0 %v24
    %418 = vmatmul.bf16.gmra.mxu0 %v408
    %v419 = vpop.f32.mrf.mxu0
    %v420 = vadd.f32 %v406, %v419
    %v421 = vpop.f32.mrf.mxu0
    %422 = vdwg.mxu0
    %v423 = vtanh.pop %v420
    %vm424 = vcmask 64512
    %425 = vst.msk [vmem:[#allocation2] sm:$0xff] %vm424, %v423
    // Predicated region
    $region14: #{tpu_custom_call.1} parent=1 // pred_check
      _
    $region15: #{tpu_custom_call.1} parent=1 // pred_check_branch
      %427 = sbr.rel (0) target = $region17
    $region16: #{tpu_custom_call.1} parent=1 // pred_region
      %429 = vsyncadd [#allocation3], 0
      %s431 = sshll.u32 [#allocation2], 4
      %s432 = int_to_ptr.vmem [resolvable:$true] %s431
      %s433 = sshll.u32 %s3, 4
      %s434 = int_to_ptr.hbm [resolvable:$true] %s433
      %436 = dma.vmem_to_hbm [thread:$0]  %s432, 128, %s434, [#allocation3]
    $region17: #{tpu_custom_call.1} parent=1 // pred_fallthru
      _
    // Predicated region
    $region18: #{tpu_custom_call.1} parent=1 // pred_check
      _
    $region19: #{tpu_custom_call.1} parent=1 // pred_check_branch
      %438 = sbr.rel (0) target = $region21
    $region20: #{tpu_custom_call.1} parent=1 // pred_region
      %440 = dma.done [#allocation3], 128
    $region21: #{tpu_custom_call.1} parent=1 // pred_fallthru
      _
    %441 = vsyncpa [#allocation3], 1

</llo_original>
